<compile_context>
chip_gen: v5e
topology: v5e:2x2
jax: 0.10.0
libtpu: 0.0.40
codegen_flags: <defaults>
</compile_context>

<pallas_src>
import numpy as np
import jax
import jax.numpy as jnp
from jax.experimental import pallas as pl
from jax.experimental.pallas import tpu as pltpu


def _idct_matrix(n: int) -> np.ndarray:
    """Deterministic orthonormal inverse DCT-II basis (n x n), float32."""
    k = np.arange(n)[:, None]          # row: output sample index
    j = np.arange(n)[None, :]          # col: frequency index
    mat = np.cos(np.pi * (2.0 * k + 1.0) * j / (2.0 * n))
    scale = np.full((1, n), np.sqrt(2.0 / n))
    scale[0, 0] = np.sqrt(1.0 / n)
    return (mat * scale).astype(np.float32)


def get_lhs_rhs_decompress(h: int, w: int):
    """Stand-in for the benchmark's get_lhs_rhs_decompress(PARAMS):
    lhs applies the inverse DCT along rows, rhs along columns."""
    lhs = _idct_matrix(h)              # [H, H]
    rhs = _idct_matrix(w).T            # [W, W]
    return lhs, rhs


def build_kron_matrix(lhs: jax.Array, rhs: jax.Array) -> jax.Array:
    """Precompute K such that  vec_row(lhs @ X @ rhs) = vec_row(X) @ K.

    K[k*W + w, h*W + j] = lhs[h, k] * rhs[w, j]  ==  kron(lhs^T, rhs).
    Built once from the (bf16-rounded) module parameters; analogous to the
    work done in the torch module's __init__.
    """
    return jnp.kron(lhs.astype(jnp.float32).T,
                    rhs.astype(jnp.float32)).astype(jnp.bfloat16)


def dct_decompress_kernel(x_ref, k_ref, o_ref):
    # x_ref: [TM, H*W] bf16 slab of flattened planes
    # k_ref: [H*W, H*W] bf16 fused inverse-DCT matrix (resident across steps)
    # o_ref: [TM, H*W] f32 lane-dense output slab
    acc = jnp.dot(x_ref[...], k_ref[...],
                  preferred_element_type=jnp.float32)          # single MXU pass
    # Match torch: bf16 matmul result, then .to(torch.float32)
    o_ref[...] = acc.astype(jnp.bfloat16).astype(jnp.float32)


def _round_up(a: int, b: int) -> int:
    return ((a + b - 1) // b) * b


def compressor_model(x: jax.Array, kmat: jax.Array) -> jax.Array:
    """x: [B, C, H, W] bf16; kmat: [H*W, H*W] bf16 -> [B, C, H, W] f32."""
    B, C, H, W = x.shape
    M, HW = B * C, H * W
    x_flat = x.reshape(M, HW)                      # lane-dense [M, 256] slab

    # Row tiling:
    #  * M (padded to a 16-row multiple) <= 1024 -> single program; the whole
    #    problem is a few KB and grid overhead dominates everything else.
    #  * larger M -> an EVEN number of >=2 grid steps ("parallel" axis shards
    #    them across v7x's two TensorCores), TM capped at 2048 so blocks
    #    (x 1 MB + out 2 MB, double-buffered, + K 128 KB ~= 6.3 MB) stay well
    #    under every generation's scoped-VMEM default, including v5e's 16 MiB.
    SINGLE_PROGRAM_MAX = 1024
    TM_CAP = 2048
    m16 = _round_up(M, 16)                         # bf16 sublane pack
    if m16 <= SINGLE_PROGRAM_MAX:
        steps, TM = 1, m16
    else:
        steps = max(2, pl.cdiv(M, TM_CAP))
        if steps % 2:
            steps += 1                             # even split across 2 TCs (v7x)
        TM = _round_up(pl.cdiv(M, steps), 16)      # <= TM_CAP by construction
    m_pad = steps * TM

    if m_pad > M:
        x_flat = jnp.pad(x_flat, ((0, m_pad - M), (0, 0)))

    cost = pl.CostEstimate(
        flops=2 * m_pad * HW * HW,
        transcendentals=0,
        bytes_accessed=m_pad * HW * 2 + HW * HW * 2 + m_pad * HW * 4,
    )

    out_flat = pl.pallas_call(
        dct_decompress_kernel,
        out_shape=jax.ShapeDtypeStruct((m_pad, HW), jnp.float32),
        grid_spec=pltpu.PrefetchScalarGridSpec(
            num_scalar_prefetch=0,
            grid=(steps,),
            in_specs=[
                pl.BlockSpec((TM, HW), lambda i: (i, 0)),   # x rows
                pl.BlockSpec((HW, HW), lambda i: (0, 0)),   # K (grid-invariant)
            ],
            out_specs=pl.BlockSpec((TM, HW), lambda i: (i, 0)),
        ),
        compiler_params=pltpu.CompilerParams(
            dimension_semantics=("parallel",)),
        cost_estimate=cost,
    )(x_flat, kmat)

    return out_flat[:M].reshape(B, C, H, W)


if __name__ == "__main__":
    B, C, H, W = 2, 3, 16, 16          # module hard-codes 3 channels (r, g, b)

    # Deterministic "parameters" (inverse-DCT basis matrices), as in __init__.
    lhs_np, rhs_np = get_lhs_rhs_decompress(H, W)
    lhs = jnp.asarray(lhs_np, dtype=jnp.bfloat16)
    rhs = jnp.asarray(rhs_np, dtype=jnp.bfloat16)
    kmat = build_kron_matrix(lhs, rhs)             # [256, 256] bf16

    # Deterministic example input (compressed coefficients), bf16.
    key = jax.random.PRNGKey(0)
    x = jax.random.normal(key, (B, C, H, W), dtype=jnp.float32).astype(jnp.bfloat16)

    out = compressor_model(x, kmat)
    out = jax.block_until_ready(out)

    # Sanity check against a plain-JAX reference of the same semantics.
    ref = jnp.einsum("hk,bckw,wj->bchj",
                     lhs.astype(jnp.float32),
                     x.astype(jnp.float32),
                     rhs.astype(jnp.float32))
    np.testing.assert_allclose(np.asarray(out), np.asarray(ref), rtol=3e-2, atol=3e-2)

    assert out.shape == (B, C, H, W) and out.dtype == jnp.float32
    print("KERNEL_OK")
</pallas_src>

<mosaic_0001>
module attributes {stable_mosaic.version = 11 : i64} {
  func.func @dct_decompress_kernel(%arg0: i32, %arg1: memref<16x256xbf16, #tpu.memory_space<vmem>>, %arg2: memref<256x256xbf16, #tpu.memory_space<vmem>>, %arg3: memref<16x256xf32, #tpu.memory_space<vmem>>) attributes {dimension_semantics = [#tpu.dimension_semantics<parallel>], iteration_bounds = array<i64: 1>, scalar_prefetch = 0 : i64, scratch_operands = 0 : i64, tpu.core_type = #tpu.core_type<tc>, window_params = [{transform_indices = @transform_0, window_bounds = array<i64: 16, 256>}, {pipeline_mode = #tpu.pipeline_mode<synchronous>, transform_indices = @transform_1, window_bounds = array<i64: 256, 256>}, {transform_indices = @transform_2, window_bounds = array<i64: 16, 256>}]} {
    %c0 = arith.constant 0 : index
    %c0_0 = arith.constant 0 : index
    %0 = vector.load %arg1[%c0, %c0_0] : memref<16x256xbf16, #tpu.memory_space<vmem>>, vector<16x256xbf16>
    %c0_1 = arith.constant 0 : index
    %c0_2 = arith.constant 0 : index
    %1 = vector.load %arg2[%c0_1, %c0_2] : memref<256x256xbf16, #tpu.memory_space<vmem>>, vector<256x256xbf16>
    %cst = arith.constant dense<0.000000e+00> : vector<16x256xf32>
    %2 = tpu.matmul %0, %1, %cst {dimension_numbers = #tpu.dot_dimension_numbers<[1], [0], [0], [1], [0, 0, 1, 1], [], []>} : vector<16x256xbf16>, vector<256x256xbf16>, vector<16x256xf32> -> vector<16x256xf32>
    %3 = arith.truncf %2 : vector<16x256xf32> to vector<16x256xbf16>
    %4 = arith.extf %3 : vector<16x256xbf16> to vector<16x256xf32>
    %c0_3 = arith.constant 0 : index
    %c0_4 = arith.constant 0 : index
    %5 = vector.load %arg3[%c0_3, %c0_4] : memref<16x256xf32, #tpu.memory_space<vmem>>, vector<16x256xf32>
    tpu.vector_store %arg3[%c0_3, %c0_4], %4 {strides = array<i32>} : memref<16x256xf32, #tpu.memory_space<vmem>>, vector<16x256xf32>,
    return
  }
  func.func @transform_0(%arg0: i32) -> (i32, i32) {
    %c0_i32 = arith.constant 0 : i32
    %c0_i32_0 = arith.constant 0 : i32
    return %arg0, %c0_i32 : i32, i32
  }
  func.func @transform_1(%arg0: i32) -> (i32, i32) {
    %c0_i32 = arith.constant 0 : i32
    %c0_i32_0 = arith.constant 0 : i32
    %c0_i32_1 = arith.constant 0 : i32
    return %c0_i32, %c0_i32_0 : i32, i32
  }
  func.func @transform_2(%arg0: i32) -> (i32, i32) {
    %c0_i32 = arith.constant 0 : i32
    %c0_i32_0 = arith.constant 0 : i32
    return %arg0, %c0_i32 : i32, i32
  }
}

</mosaic_0001>

<llo_original>
// kernel: tpu_custom_call.1
$region0: #{tpu_custom_call.1}
  #allocation0 [shape = 'u32[]', space=smem, size = 0x4, offset = 0x4, fixed_abs, tag = 'smem constant byte address 0x4 - core index']
  #allocation1 [shape = 'u32[72,128]{1,0:T(1,128)}', space=vmem, size = 0x9000, scoped, tag = 'internal scratch']
  %s0 = inlined_call_operand.hbm [shape: bf16[16,256], index: 0, kind: input, shape index: {}]
  %s1 = inlined_call_operand.hbm [shape: bf16[256,256], index: 1, kind: input, shape index: {}]
  %s2 = inlined_call_operand.hbm [shape: f32[16,256], index: 2, kind: output, shape index: {}]
  %s3 = sld [smem:[#allocation0]]
  $region26: #{tpu_custom_call.1} parent=0
    _
  %s5 = ssub.s32 1, %s3
  %s6 = scalar_select 0, %s5, %s3
  $region1: #{tpu_custom_call.1} parent=0
    #allocation2 [shape = 'u8[8192]{0}', space=vmem, size = 0x2000, scoped, tag = 'input window, operand 0, single buffered']
    #allocation3 [shape = 's32[1]{0}', space=sflag, size = 0x4, scoped, tag = 'scoped memory for tpu_custom_call.1']
    #allocation4 [shape = 's32[1]{0}', space=sflag, size = 0x4, scoped, tag = 'scoped memory for tpu_custom_call.1']
    #allocation5 [shape = 'u8[131072]{0}', space=vmem, size = 0x20000, scoped, tag = 'input window, operand 1, single buffered']
    #allocation6 [shape = 's32[1]{0}', space=sflag, size = 0x4, scoped, tag = 'scoped memory for tpu_custom_call.1']
    #allocation7 [shape = 'u8[16384]{0}', space=vmem, size = 0x4000, scoped, tag = 'output window, operand 0, single buffered']
    %7 = vsyncpa [#allocation3], 0
    %8 = vsyncpa [#allocation6], 0
    %9 = vsyncpa [#allocation4], 0
    // Predicated region
    $region2: #{tpu_custom_call.1} parent=1 // pred_check
      _
    $region3: #{tpu_custom_call.1} parent=1 // pred_check_branch
      %11 = sbr.rel (0) target = $region5
    $region4: #{tpu_custom_call.1} parent=1 // pred_region
      %13 = vsyncadd [#allocation3], 0
      %s14 = sshll.u32 %s0, 4
      %s15 = int_to_ptr.hbm [resolvable:$true] %s14
      %s16 = sshll.u32 [#allocation2], 4
      %s17 = int_to_ptr.vmem [resolvable:$true] %s16
      %22 = dma.hbm_to_vmem [thread:$0]  %s15, 256, %s17, [#allocation3], 128, 128, 8
    $region5: #{tpu_custom_call.1} parent=1 // pred_fallthru
      _
    // Predicated region
    $region6: #{tpu_custom_call.1} parent=1 // pred_check
      _
    $region7: #{tpu_custom_call.1} parent=1 // pred_check_branch
      %24 = sbr.rel (0) target = $region9
    $region8: #{tpu_custom_call.1} parent=1 // pred_region
      %26 = vsyncadd [#allocation6], 0
      %s27 = sshll.u32 %s1, 4
      %s28 = int_to_ptr.hbm [resolvable:$true] %s27
      %s29 = sshll.u32 [#allocation5], 4
      %s30 = int_to_ptr.vmem [resolvable:$true] %s29
      %35 = dma.hbm_to_vmem [thread:$0]  %s28, 4096, %s30, [#allocation6], 128, 128, 8
    $region9: #{tpu_custom_call.1} parent=1 // pred_fallthru
      _
    // Predicated region
    $region10: #{tpu_custom_call.1} parent=1 // pred_check
      _
    $region11: #{tpu_custom_call.1} parent=1 // pred_check_branch
      %37 = sbr.rel (0) target = $region13
    $region12: #{tpu_custom_call.1} parent=1 // pred_region
      %39 = dma.done [#allocation3], 256
    $region13: #{tpu_custom_call.1} parent=1 // pred_fallthru
      _
    // Predicated region
    $region14: #{tpu_custom_call.1} parent=1 // pred_check
      _
    $region15: #{tpu_custom_call.1} parent=1 // pred_check_branch
      %41 = sbr.rel (0) target = $region17
    $region16: #{tpu_custom_call.1} parent=1 // pred_region
      %43 = dma.done [#allocation6], 4096
    $region17: #{tpu_custom_call.1} parent=1 // pred_fallthru
      _
    %v44 = vld [vmem:[#allocation2] sm:$0xff]
    %v45 = vld [vmem:[#allocation2 + $0x8] sm:$0xff]
    %v46 = vld [vmem:[#allocation5] sm:$0xff]
    %v47 = vld [vmem:[#allocation5 + $0x8] sm:$0xff]
    %v48 = vld [vmem:[#allocation5 + $0x10] sm:$0xff]
    %v49 = vld [vmem:[#allocation5 + $0x18] sm:$0xff]
    %v50 = vld [vmem:[#allocation5 + $0x20] sm:$0xff]
    %v51 = vld [vmem:[#allocation5 + $0x28] sm:$0xff]
    %v52 = vld [vmem:[#allocation5 + $0x30] sm:$0xff]
    %v53 = vld [vmem:[#allocation5 + $0x38] sm:$0xff]
    %v54 = vld [vmem:[#allocation5 + $0x40] sm:$0xff]
    %v55 = vld [vmem:[#allocation5 + $0x48] sm:$0xff]
    %v56 = vld [vmem:[#allocation5 + $0x50] sm:$0xff]
    %v57 = vld [vmem:[#allocation5 + $0x58] sm:$0xff]
    %v58 = vld [vmem:[#allocation5 + $0x60] sm:$0xff]
    %v59 = vld [vmem:[#allocation5 + $0x68] sm:$0xff]
    %v60 = vld [vmem:[#allocation5 + $0x70] sm:$0xff]
    %v61 = vld [vmem:[#allocation5 + $0x78] sm:$0xff]
    %v62 = vld [vmem:[#allocation5 + $0x80] sm:$0xff]
    %v63 = vld [vmem:[#allocation5 + $0x88] sm:$0xff]
    %v64 = vld [vmem:[#allocation5 + $0x90] sm:$0xff]
    %v65 = vld [vmem:[#allocation5 + $0x98] sm:$0xff]
    %v66 = vld [vmem:[#allocation5 + $0xa0] sm:$0xff]
    %v67 = vld [vmem:[#allocation5 + $0xa8] sm:$0xff]
    %v68 = vld [vmem:[#allocation5 + $0xb0] sm:$0xff]
    %v69 = vld [vmem:[#allocation5 + $0xb8] sm:$0xff]
    %v70 = vld [vmem:[#allocation5 + $0xc0] sm:$0xff]
    %v71 = vld [vmem:[#allocation5 + $0xc8] sm:$0xff]
    %v72 = vld [vmem:[#allocation5 + $0xd0] sm:$0xff]
    %v73 = vld [vmem:[#allocation5 + $0xd8] sm:$0xff]
    %v74 = vld [vmem:[#allocation5 + $0xe0] sm:$0xff]
    %v75 = vld [vmem:[#allocation5 + $0xe8] sm:$0xff]
    %v76 = vld [vmem:[#allocation5 + $0xf0] sm:$0xff]
    %v77 = vld [vmem:[#allocation5 + $0xf8] sm:$0xff]
    %v80 = vunpack.c.l.b16 %v44
    %v81 = vunpack.c.h.b16 %v44
    %v82 = vunpack.c.l.b16 %v45
    %v83 = vunpack.c.h.b16 %v45
    %v84 = vpack.c.b16 %v82, %v80
    %v85 = vpack.c.b16 %v83, %v81
    %v120 = vunpack.c.l.b16 %v46
    %v121 = vunpack.c.h.b16 %v46
    %v122 = vunpack.c.l.b16 %v47
    %v123 = vunpack.c.h.b16 %v47
    %v124 = vunpack.c.l.b16 %v48
    %v125 = vunpack.c.h.b16 %v48
    %v126 = vunpack.c.l.b16 %v49
    %v127 = vunpack.c.h.b16 %v49
    %v128 = vunpack.c.l.b16 %v50
    %v129 = vunpack.c.h.b16 %v50
    %v130 = vunpack.c.l.b16 %v51
    %v131 = vunpack.c.h.b16 %v51
    %v132 = vunpack.c.l.b16 %v52
    %v133 = vunpack.c.h.b16 %v52
    %v134 = vunpack.c.l.b16 %v53
    %v135 = vunpack.c.h.b16 %v53
    %v136 = vunpack.c.l.b16 %v54
    %v137 = vunpack.c.h.b16 %v54
    %v138 = vunpack.c.l.b16 %v55
    %v139 = vunpack.c.h.b16 %v55
    %v140 = vunpack.c.l.b16 %v56
    %v141 = vunpack.c.h.b16 %v56
    %v142 = vunpack.c.l.b16 %v57
    %v143 = vunpack.c.h.b16 %v57
    %v144 = vunpack.c.l.b16 %v58
    %v145 = vunpack.c.h.b16 %v58
    %v146 = vunpack.c.l.b16 %v59
    %v147 = vunpack.c.h.b16 %v59
    %v148 = vunpack.c.l.b16 %v60
    %v149 = vunpack.c.h.b16 %v60
    %v150 = vunpack.c.l.b16 %v61
    %v151 = vunpack.c.h.b16 %v61
    %v152 = vunpack.c.l.b16 %v62
    %v153 = vunpack.c.h.b16 %v62
    %v154 = vunpack.c.l.b16 %v63
    %v155 = vunpack.c.h.b16 %v63
    %v156 = vunpack.c.l.b16 %v64
    %v157 = vunpack.c.h.b16 %v64
    %v158 = vunpack.c.l.b16 %v65
    %v159 = vunpack.c.h.b16 %v65
    %v160 = vunpack.c.l.b16 %v66
    %v161 = vunpack.c.h.b16 %v66
    %v162 = vunpack.c.l.b16 %v67
    %v163 = vunpack.c.h.b16 %v67
    %v164 = vunpack.c.l.b16 %v68
    %v165 = vunpack.c.h.b16 %v68
    %v166 = vunpack.c.l.b16 %v69
    %v167 = vunpack.c.h.b16 %v69
    %v168 = vunpack.c.l.b16 %v70
    %v169 = vunpack.c.h.b16 %v70
    %v170 = vunpack.c.l.b16 %v71
    %v171 = vunpack.c.h.b16 %v71
    %v172 = vunpack.c.l.b16 %v72
    %v173 = vunpack.c.h.b16 %v72
    %v174 = vunpack.c.l.b16 %v73
    %v175 = vunpack.c.h.b16 %v73
    %v176 = vunpack.c.l.b16 %v74
    %v177 = vunpack.c.h.b16 %v74
    %v178 = vunpack.c.l.b16 %v75
    %v179 = vunpack.c.h.b16 %v75
    %v180 = vunpack.c.l.b16 %v76
    %v181 = vunpack.c.h.b16 %v76
    %v182 = vunpack.c.l.b16 %v77
    %v183 = vunpack.c.h.b16 %v77
    %v184 = vpack.c.b16 %v122, %v120
    %v185 = vpack.c.b16 %v123, %v121
    %v186 = vpack.c.b16 %v126, %v124
    %v187 = vpack.c.b16 %v127, %v125
    %v188 = vpack.c.b16 %v130, %v128
    %v189 = vpack.c.b16 %v131, %v129
    %v190 = vpack.c.b16 %v134, %v132
    %v191 = vpack.c.b16 %v135, %v133
    %v192 = vpack.c.b16 %v138, %v136
    %v193 = vpack.c.b16 %v139, %v137
    %v194 = vpack.c.b16 %v142, %v140
    %v195 = vpack.c.b16 %v143, %v141
    %v196 = vpack.c.b16 %v146, %v144
    %v197 = vpack.c.b16 %v147, %v145
    %v198 = vpack.c.b16 %v150, %v148
    %v199 = vpack.c.b16 %v151, %v149
    %v200 = vpack.c.b16 %v154, %v152
    %v201 = vpack.c.b16 %v155, %v153
    %v202 = vpack.c.b16 %v158, %v156
    %v203 = vpack.c.b16 %v159, %v157
    %v204 = vpack.c.b16 %v162, %v160
    %v205 = vpack.c.b16 %v163, %v161
    %v206 = vpack.c.b16 %v166, %v164
    %v207 = vpack.c.b16 %v167, %v165
    %v208 = vpack.c.b16 %v170, %v168
    %v209 = vpack.c.b16 %v171, %v169
    %v210 = vpack.c.b16 %v174, %v172
    %v211 = vpack.c.b16 %v175, %v173
    %v212 = vpack.c.b16 %v178, %v176
    %v213 = vpack.c.b16 %v179, %v177
    %v214 = vpack.c.b16 %v182, %v180
    %v215 = vpack.c.b16 %v183, %v181
    %248 = vmatpush.bf16.msra.mxu0 %v198
    %249 = vmatpush.bf16.msra.mxu0 %v196
    %250 = vmatpush.bf16.msra.mxu0 %v194
    %251 = vmatpush.bf16.msra.mxu0 %v192
    %252 = vmatpush.bf16.msra.mxu0 %v190
    %253 = vmatpush.bf16.msra.mxu0 %v188
    %254 = vmatpush.bf16.msra.mxu0 %v186
    %255 = vmatpush.bf16.msra.mxu0 %v184
    %256 = vmatmul.bf16.gmra.mxu0 %v84
    %v257 = vpop.f32.mrf.mxu0
    %v258 = vadd.f32 0.0, %v257
    %v259 = vpop.f32.mrf.mxu0
    %v260 = vadd.f32 0.0, %v259
    %261 = vdwg.mxu0
    %262 = vmatpush.bf16.msra.mxu0 %v214
    %263 = vmatpush.bf16.msra.mxu0 %v212
    %264 = vmatpush.bf16.msra.mxu0 %v210
    %265 = vmatpush.bf16.msra.mxu0 %v208
    %266 = vmatpush.bf16.msra.mxu0 %v206
    %267 = vmatpush.bf16.msra.mxu0 %v204
    %268 = vmatpush.bf16.msra.mxu0 %v202
    %269 = vmatpush.bf16.msra.mxu0 %v200
    %270 = vmatmul.bf16.gmra.mxu0 %v85
    %v271 = vpop.f32.mrf.mxu0
    %v272 = vadd.f32 %v258, %v271
    %v273 = vpop.f32.mrf.mxu0
    %v274 = vadd.f32 %v260, %v273
    %275 = vdwg.mxu0
    %276 = vmatpush.bf16.msra.mxu0 %v199
    %277 = vmatpush.bf16.msra.mxu0 %v197
    %278 = vmatpush.bf16.msra.mxu0 %v195
    %279 = vmatpush.bf16.msra.mxu0 %v193
    %280 = vmatpush.bf16.msra.mxu0 %v191
    %281 = vmatpush.bf16.msra.mxu0 %v189
    %282 = vmatpush.bf16.msra.mxu0 %v187
    %283 = vmatpush.bf16.msra.mxu0 %v185
    %284 = vmatmul.bf16.gmra.mxu0 %v84
    %v285 = vpop.f32.mrf.mxu0
    %v286 = vadd.f32 0.0, %v285
    %v287 = vpop.f32.mrf.mxu0
    %v288 = vadd.f32 0.0, %v287
    %289 = vdwg.mxu0
    %290 = vmatpush.bf16.msra.mxu0 %v215
    %291 = vmatpush.bf16.msra.mxu0 %v213
    %292 = vmatpush.bf16.msra.mxu0 %v211
    %293 = vmatpush.bf16.msra.mxu0 %v209
    %294 = vmatpush.bf16.msra.mxu0 %v207
    %295 = vmatpush.bf16.msra.mxu0 %v205
    %296 = vmatpush.bf16.msra.mxu0 %v203
    %297 = vmatpush.bf16.msra.mxu0 %v201
    %298 = vmatmul.bf16.gmra.mxu0 %v85
    %v299 = vpop.f32.mrf.mxu0
    %v300 = vadd.f32 %v286, %v299
    %v301 = vpop.f32.mrf.mxu0
    %v302 = vadd.f32 %v288, %v301
    %303 = vdwg.mxu0
    %v304 = vpack.c.bf16 %v274, %v272
    %v305 = vpack.c.bf16 %v302, %v300
    %v306 = vunpack.c.l.bf16 %v304
    %v307 = vunpack.c.l.bf16 %v305
    %v308 = vunpack.c.h.bf16 %v304
    %v309 = vunpack.c.h.bf16 %v305
    %310 = vst [vmem:[#allocation7] sm:$0xff] %v306
    %311 = vst [vmem:[#allocation7 + $0x8] sm:$0xff] %v307
    %312 = vst [vmem:[#allocation7 + $0x10] sm:$0xff] %v308
    %313 = vst [vmem:[#allocation7 + $0x18] sm:$0xff] %v309
    // Predicated region
    $region18: #{tpu_custom_call.1} parent=1 // pred_check
      _
    $region19: #{tpu_custom_call.1} parent=1 // pred_check_branch
      %315 = sbr.rel (0) target = $region21
    $region20: #{tpu_custom_call.1} parent=1 // pred_region
      %317 = vsyncadd [#allocation4], 0
      %s318 = sshll.u32 [#allocation7], 4
      %s319 = int_to_ptr.vmem [resolvable:$true] %s318
      %s320 = sshll.u32 %s2, 4
      %s321 = int_to_ptr.hbm [resolvable:$true] %s320
      %326 = dma.vmem_to_hbm [thread:$0]  %s319, 512, %s321, [#allocation4], 256, 256, 16
    $region21: #{tpu_custom_call.1} parent=1 // pred_fallthru
      _
    // Predicated region
    $region22: #{tpu_custom_call.1} parent=1 // pred_check
      _
    $region23: #{tpu_custom_call.1} parent=1 // pred_check_branch
      %328 = sbr.rel (0) target = $region25
    $region24: #{tpu_custom_call.1} parent=1 // pred_region
      %330 = dma.done [#allocation4], 512
    $region25: #{tpu_custom_call.1} parent=1 // pred_fallthru
      _
    %331 = vsyncpa [#allocation3], 1
    %332 = vsyncpa [#allocation6], 1
    %333 = vsyncpa [#allocation4], 1

</llo_original>
